<compile_context>
chip_gen: v6e
topology: v6e:2x2x1
jax: 0.10.0
libtpu: 0.0.40
codegen_flags: <defaults>
</compile_context>

<pallas_src>
import functools

import jax
import jax.numpy as jnp
from jax.experimental import pallas as pl
from jax.experimental.pallas import tpu as pltpu


def _round_up(x, m):
    return ((x + m - 1) // m) * m


def _mf_gather_kernel(uid_ref, pid_ref, nid_ref,        # SMEM id vectors (scalar prefetch)
                      user_hbm, item_hbm,               # full tables in HBM (pl.ANY)
                      uemb_ref, pemb_ref, nemb_ref,     # (R, D) output blocks (VMEM)
                      reg_ref,                          # (1, 1, 1) per-chunk reg partial
                      ubuf, pbuf, nbuf,                 # (R, D) gather scratch (VMEM)
                      sem,                              # 3 DMA semaphores (one per stream)
                      *, rows_per_chunk, batch):
    R = rows_per_chunk
    i = pl.program_id(0)
    base = i * R

    # ---- Issue all 3*R row-gather DMAs for this chunk before waiting on any,
    # ---- so the entire chunk's tiny row fetches are in flight concurrently.
    @pl.loop(0, R)
    def _issue(r):
        u_id = uid_ref[base + r]
        p_id = pid_ref[base + r]
        n_id = nid_ref[base + r]
        pltpu.make_async_copy(user_hbm.at[pl.ds(u_id, 1), :],
                              ubuf.at[pl.ds(r, 1), :], sem.at[0]).start()
        pltpu.make_async_copy(item_hbm.at[pl.ds(p_id, 1), :],
                              pbuf.at[pl.ds(r, 1), :], sem.at[1]).start()
        pltpu.make_async_copy(item_hbm.at[pl.ds(n_id, 1), :],
                              nbuf.at[pl.ds(n_id * 0 + r, 1), :], sem.at[2]).start()

    # ---- Drain: one wait per issued copy (identically-shaped descriptor ->
    # ---- identical byte count on the shared per-stream semaphore).
    @pl.loop(0, R)
    def _drain(r):
        pltpu.make_async_copy(user_hbm.at[pl.ds(0, 1), :],
                              ubuf.at[pl.ds(0, 1), :], sem.at[0]).wait()
        pltpu.make_async_copy(item_hbm.at[pl.ds(0, 1), :],
                              pbuf.at[pl.ds(0, 1), :], sem.at[1]).wait()
        pltpu.make_async_copy(item_hbm.at[pl.ds(0, 1), :],
                              nbuf.at[pl.ds(0, 1), :], sem.at[2]).wait()

    u = ubuf[...]
    p = pbuf[...]
    n = nbuf[...]

    # Dense (R, D) block stores into the pipelined output blocks.
    uemb_ref[...] = u
    pemb_ref[...] = p
    nemb_ref[...] = n

    # Per-chunk regularizer partial: sum over VALID rows of
    # ||u||^2 + ||p||^2 + ||n||^2 (padded tail rows of the last chunk masked).
    uf = u.astype(jnp.float32)
    pf = p.astype(jnp.float32)
    nf = n.astype(jnp.float32)
    sq = uf * uf + pf * pf + nf * nf                              # (R, D), VPU only
    row = jax.lax.broadcasted_iota(jnp.int32, sq.shape, 0)        # sublane index
    valid = (base + row) < batch
    reg_ref[...] = jnp.sum(jnp.where(valid, sq, 0.0)).reshape(1, 1, 1)


def mf_forward(user_ids, pos_ids, neg_ids, user_table, item_table,
               *, rows_per_chunk=None):
    """Returns (user_emb, pos_emb, neg_emb, reg) matching the PyTorch forward."""
    B = int(user_ids.shape[0])
    n_users, D = user_table.shape
    n_items, D2 = item_table.shape
    assert D == D2, "user/item embedding dims must match"
    dtype = user_table.dtype
    itemsize = jnp.dtype(dtype).itemsize

    # Rows per grid step: multiple of 8 sublanes, capped at 512.
    if rows_per_chunk is None:
        rows_per_chunk = min(512, _round_up(B, 8))
    R = max(8, _round_up(int(rows_per_chunk), 8))
    num_chunks = (B + R - 1) // R
    B_pad = num_chunks * R

    def _prep(ids):
        ids = jnp.asarray(ids).reshape(-1).astype(jnp.int32)
        return jnp.pad(ids, (0, B_pad - B))   # padded ids gather row 0 (masked in reg)

    uid, pid, nid = _prep(user_ids), _prep(pos_ids), _prep(neg_ids)

    emb_spec = pl.BlockSpec((R, D), lambda i, u, p, n: (i, 0))
    reg_spec = pl.BlockSpec((1, 1, 1), lambda i, u, p, n: (i, 0, 0))

    grid_spec = pltpu.PrefetchScalarGridSpec(
        num_scalar_prefetch=3,
        grid=(num_chunks,),
        in_specs=[pl.BlockSpec(memory_space=pl.ANY),   # user_table stays in HBM
                  pl.BlockSpec(memory_space=pl.ANY)],  # item_table stays in HBM (once)
        out_specs=(emb_spec, emb_spec, emb_spec, reg_spec),
        scratch_shapes=[
            pltpu.VMEM((R, D), dtype),
            pltpu.VMEM((R, D), dtype),
            pltpu.VMEM((R, D), dtype),
            pltpu.SemaphoreType.DMA((3,)),
        ],
    )

    # VMEM budget: 3 double-buffered (R, D) output blocks + 3 (R, D) scratch.
    needed = 9 * R * D * itemsize
    vmem_limit = int(min(64 * 1024 * 1024, needed + 4 * 1024 * 1024))

    cost = pl.CostEstimate(
        flops=6 * B_pad * D,                               # squares + adds for reg
        transcendentals=0,
        bytes_accessed=(itemsize * 6 * B_pad * D           # gathered rows + writeback
                        + 4 * (3 * B_pad + num_chunks)),   # ids + reg partials
    )

    uemb, pemb, nemb, reg_part = pl.pallas_call(
        functools.partial(_mf_gather_kernel, rows_per_chunk=R, batch=B),
        out_shape=(
            jax.ShapeDtypeStruct((B_pad, D), dtype),
            jax.ShapeDtypeStruct((B_pad, D), dtype),
            jax.ShapeDtypeStruct((B_pad, D), dtype),
            jax.ShapeDtypeStruct((num_chunks, 1, 1), jnp.float32),
        ),
        grid_spec=grid_spec,
        compiler_params=pltpu.CompilerParams(
            # No carried state across chunks -> batch axis is truly parallel
            # (lets v7x shard chunks across its 2 TensorCores).
            dimension_semantics=("parallel",),
            vmem_limit_bytes=vmem_limit,
        ),
        cost_estimate=cost,
    )(uid, pid, nid, user_table, item_table)

    # sum_i(||u_i||^2 + ||p_i||^2 + ||n_i||^2) / B
    #   == mean(||u||^2) + mean(||p||^2) + mean(||n||^2)
    reg = jnp.sum(reg_part) * (1.0 / B)
    return uemb[:B], pemb[:B], nemb[:B], reg


def mf_forward_ref(user_ids, pos_ids, neg_ids, user_table, item_table):
    """Pure-JAX reference for correctness checking."""
    ue = user_table[user_ids]
    pe = item_table[pos_ids]
    ne = item_table[neg_ids]
    reg = (jnp.mean(jnp.sum(ue * ue, axis=1))
           + jnp.mean(jnp.sum(pe * pe, axis=1))
           + jnp.mean(jnp.sum(ne * ne, axis=1)))
    return ue, pe, ne, reg


if __name__ == "__main__":
    # Small deterministic config (mirrors config['n_users'], ['n_items'], ['dim']).
    # dim=128 keeps gathers/stores lane-dense; batch=200 with R=64 exercises
    # multiple chunks plus a padded (masked) tail chunk.
    n_users, n_items, dim, batch = 256, 512, 128, 200

    key = jax.random.PRNGKey(0)
    k_u, k_i, k_ul, k_pl, k_nl = jax.random.split(key, 5)

    # normal_(std=0.1) initialization of both embedding tables
    user_table = 0.1 * jax.random.normal(k_u, (n_users, dim), dtype=jnp.float32)
    item_table = 0.1 * jax.random.normal(k_i, (n_items, dim), dtype=jnp.float32)

    # user_list, pos_items, neg_items (int indices)
    user_list = jax.random.randint(k_ul, (batch,), 0, n_users, dtype=jnp.int32)
    pos_items = jax.random.randint(k_pl, (batch,), 0, n_items, dtype=jnp.int32)
    neg_items = jax.random.randint(k_nl, (batch,), 0, n_items, dtype=jnp.int32)

    ue, pe, ne, reg = mf_forward(user_list, pos_items, neg_items,
                                 user_table, item_table, rows_per_chunk=64)
    jax.block_until_ready((ue, pe, ne, reg))

    # Verify against pure-JAX reference
    ue_r, pe_r, ne_r, reg_r = mf_forward_ref(user_list, pos_items, neg_items,
                                             user_table, item_table)
    assert jnp.allclose(ue, ue_r, atol=1e-6)
    assert jnp.allclose(pe, pe_r, atol=1e-6)
    assert jnp.allclose(ne, ne_r, atol=1e-6)
    assert jnp.allclose(reg, reg_r, rtol=1e-5, atol=1e-4)

    print("KERNEL_OK")
</pallas_src>

<mosaic_0001>
module attributes {stable_mosaic.version = 11 : i64} {
  func.func @_mf_gather_kernel(%arg0: i32, %arg1: memref<256xi32, #tpu.memory_space<smem>>, %arg2: memref<256xi32, #tpu.memory_space<smem>>, %arg3: memref<256xi32, #tpu.memory_space<smem>>, %arg4: memref<256x128xf32, #tpu.memory_space<any>>, %arg5: memref<512x128xf32, #tpu.memory_space<any>>, %arg6: memref<64x128xf32, #tpu.memory_space<vmem>>, %arg7: memref<64x128xf32, #tpu.memory_space<vmem>>, %arg8: memref<64x128xf32, #tpu.memory_space<vmem>>, %arg9: memref<1x1x1xf32, #tpu.memory_space<vmem>>, %arg10: memref<64x128xf32, #tpu.memory_space<vmem>>, %arg11: memref<64x128xf32, #tpu.memory_space<vmem>>, %arg12: memref<64x128xf32, #tpu.memory_space<vmem>>, %arg13: memref<3x!tpu.dma_semaphore, #tpu.memory_space<semaphore_mem>>) attributes {dimension_semantics = [#tpu.dimension_semantics<parallel>], iteration_bounds = array<i64: 4>, scalar_prefetch = 3 : i64, scratch_operands = 4 : i64, tpu.core_type = #tpu.core_type<tc>, window_params = [{}, {}, {transform_indices = @transform_2, window_bounds = array<i64: 64, 128>}, {transform_indices = @transform_3, window_bounds = array<i64: 64, 128>}, {transform_indices = @transform_4, window_bounds = array<i64: 64, 128>}, {transform_indices = @transform_5, window_bounds = array<i64: 1, 1, 1>}]} {
    %c64_i32 = arith.constant 64 : i32
    %0 = arith.muli %arg0, %c64_i32 : i32
    %c0_i32 = arith.constant 0 : i32
    %c64_i32_0 = arith.constant 64 : i32
    %1 = arith.addi %c0_i32, %c64_i32_0 : i32
    %c1_i32 = arith.constant 1 : i32
    scf.for %arg14 = %c0_i32 to %1 step %c1_i32  : i32 {
      %c1_i32_20 = arith.constant 1 : i32
      %27 = arith.muli %arg14, %c1_i32_20 : i32
      %c0_i32_21 = arith.constant 0 : i32
      %28 = arith.addi %c0_i32_21, %27 : i32
      %29 = arith.addi %0, %28 : i32
      %30 = arith.index_cast %29 : i32 to index
      %31 = memref.load %arg1[%30] : memref<256xi32, #tpu.memory_space<smem>>
      %32 = arith.addi %0, %28 : i32
      %33 = arith.index_cast %32 : i32 to index
      %34 = memref.load %arg2[%33] : memref<256xi32, #tpu.memory_space<smem>>
      %35 = arith.addi %0, %28 : i32
      %36 = arith.index_cast %35 : i32 to index
      %37 = memref.load %arg3[%36] : memref<256xi32, #tpu.memory_space<smem>>
      %c0_i32_22 = arith.constant 0 : i32
      %c0_i32_23 = arith.constant 0 : i32
      %38 = tpu.memref_slice %arg4[%31, %c0_i32_23] : memref<256x128xf32, #tpu.memory_space<any>> -> memref<1x128xf32, #tpu.memory_space<any>>
      %c0_i32_24 = arith.constant 0 : i32
      %39 = tpu.memref_slice %arg10[%28, %c0_i32_24] : memref<64x128xf32, #tpu.memory_space<vmem>> -> memref<1x128xf32, #tpu.memory_space<vmem>>
      %40 = tpu.memref_slice %arg13[%c0_i32_22] : memref<3x!tpu.dma_semaphore, #tpu.memory_space<semaphore_mem>> -> memref<1x!tpu.dma_semaphore, #tpu.memory_space<semaphore_mem>>
      %41 = tpu.memref_squeeze %40 : memref<1x!tpu.dma_semaphore, #tpu.memory_space<semaphore_mem>> -> memref<!tpu.dma_semaphore, #tpu.memory_space<semaphore_mem>>
      tpu.enqueue_dma source(%38 : memref<1x128xf32, #tpu.memory_space<any>>) target(%39 : memref<1x128xf32, #tpu.memory_space<vmem>>) target_semaphore(%41 : memref<!tpu.dma_semaphore, #tpu.memory_space<semaphore_mem>>)
      %c1_i32_25 = arith.constant 1 : i32
      %c0_i32_26 = arith.constant 0 : i32
      %42 = tpu.memref_slice %arg5[%34, %c0_i32_26] : memref<512x128xf32, #tpu.memory_space<any>> -> memref<1x128xf32, #tpu.memory_space<any>>
      %c0_i32_27 = arith.constant 0 : i32
      %43 = tpu.memref_slice %arg11[%28, %c0_i32_27] : memref<64x128xf32, #tpu.memory_space<vmem>> -> memref<1x128xf32, #tpu.memory_space<vmem>>
      %44 = tpu.memref_slice %arg13[%c1_i32_25] : memref<3x!tpu.dma_semaphore, #tpu.memory_space<semaphore_mem>> -> memref<1x!tpu.dma_semaphore, #tpu.memory_space<semaphore_mem>>
      %45 = tpu.memref_squeeze %44 : memref<1x!tpu.dma_semaphore, #tpu.memory_space<semaphore_mem>> -> memref<!tpu.dma_semaphore, #tpu.memory_space<semaphore_mem>>
      tpu.enqueue_dma source(%42 : memref<1x128xf32, #tpu.memory_space<any>>) target(%43 : memref<1x128xf32, #tpu.memory_space<vmem>>) target_semaphore(%45 : memref<!tpu.dma_semaphore, #tpu.memory_space<semaphore_mem>>)
      %c0_i32_28 = arith.constant 0 : i32
      %46 = arith.muli %37, %c0_i32_28 : i32
      %47 = arith.addi %46, %28 : i32
      %c2_i32 = arith.constant 2 : i32
      %c0_i32_29 = arith.constant 0 : i32
      %48 = tpu.memref_slice %arg5[%37, %c0_i32_29] : memref<512x128xf32, #tpu.memory_space<any>> -> memref<1x128xf32, #tpu.memory_space<any>>
      %c0_i32_30 = arith.constant 0 : i32
      %49 = tpu.memref_slice %arg12[%47, %c0_i32_30] : memref<64x128xf32, #tpu.memory_space<vmem>> -> memref<1x128xf32, #tpu.memory_space<vmem>>
      %50 = tpu.memref_slice %arg13[%c2_i32] : memref<3x!tpu.dma_semaphore, #tpu.memory_space<semaphore_mem>> -> memref<1x!tpu.dma_semaphore, #tpu.memory_space<semaphore_mem>>
      %51 = tpu.memref_squeeze %50 : memref<1x!tpu.dma_semaphore, #tpu.memory_space<semaphore_mem>> -> memref<!tpu.dma_semaphore, #tpu.memory_space<semaphore_mem>>
      tpu.enqueue_dma source(%48 : memref<1x128xf32, #tpu.memory_space<any>>) target(%49 : memref<1x128xf32, #tpu.memory_space<vmem>>) target_semaphore(%51 : memref<!tpu.dma_semaphore, #tpu.memory_space<semaphore_mem>>)
    }
    %c64_i32_1 = arith.constant 64 : i32
    %c0_i32_2 = arith.constant 0 : i32
    %c64_i32_3 = arith.constant 64 : i32
    %2 = arith.addi %c0_i32_2, %c64_i32_3 : i32
    %c1_i32_4 = arith.constant 1 : i32
    scf.for %arg14 = %c0_i32_2 to %2 step %c1_i32_4  : i32 {
      %c0_i32_20 = arith.constant 0 : i32
      %c0_i32_21 = arith.constant 0 : i32
      %c0_i32_22 = arith.constant 0 : i32
      %27 = tpu.memref_slice %arg4[%c0_i32_21, %c0_i32_22] : memref<256x128xf32, #tpu.memory_space<any>> -> memref<1x128xf32, #tpu.memory_space<any>>
      %c0_i32_23 = arith.constant 0 : i32
      %c0_i32_24 = arith.constant 0 : i32
      %28 = tpu.memref_slice %arg10[%c0_i32_23, %c0_i32_24] : memref<64x128xf32, #tpu.memory_space<vmem>> -> memref<1x128xf32, #tpu.memory_space<vmem>>
      %29 = tpu.memref_slice %arg13[%c0_i32_20] : memref<3x!tpu.dma_semaphore, #tpu.memory_space<semaphore_mem>> -> memref<1x!tpu.dma_semaphore, #tpu.memory_space<semaphore_mem>>
      %30 = tpu.memref_squeeze %29 : memref<1x!tpu.dma_semaphore, #tpu.memory_space<semaphore_mem>> -> memref<!tpu.dma_semaphore, #tpu.memory_space<semaphore_mem>>
      tpu.wait_dma2 semaphore(%30 : memref<!tpu.dma_semaphore, #tpu.memory_space<semaphore_mem>>) src(%27 : memref<1x128xf32, #tpu.memory_space<any>>) dst(%28 : memref<1x128xf32, #tpu.memory_space<vmem>>)
      %c1_i32_25 = arith.constant 1 : i32
      %c0_i32_26 = arith.constant 0 : i32
      %c0_i32_27 = arith.constant 0 : i32
      %31 = tpu.memref_slice %arg5[%c0_i32_26, %c0_i32_27] : memref<512x128xf32, #tpu.memory_space<any>> -> memref<1x128xf32, #tpu.memory_space<any>>
      %c0_i32_28 = arith.constant 0 : i32
      %c0_i32_29 = arith.constant 0 : i32
      %32 = tpu.memref_slice %arg11[%c0_i32_28, %c0_i32_29] : memref<64x128xf32, #tpu.memory_space<vmem>> -> memref<1x128xf32, #tpu.memory_space<vmem>>
      %33 = tpu.memref_slice %arg13[%c1_i32_25] : memref<3x!tpu.dma_semaphore, #tpu.memory_space<semaphore_mem>> -> memref<1x!tpu.dma_semaphore, #tpu.memory_space<semaphore_mem>>
      %34 = tpu.memref_squeeze %33 : memref<1x!tpu.dma_semaphore, #tpu.memory_space<semaphore_mem>> -> memref<!tpu.dma_semaphore, #tpu.memory_space<semaphore_mem>>
      tpu.wait_dma2 semaphore(%34 : memref<!tpu.dma_semaphore, #tpu.memory_space<semaphore_mem>>) src(%31 : memref<1x128xf32, #tpu.memory_space<any>>) dst(%32 : memref<1x128xf32, #tpu.memory_space<vmem>>)
      %c2_i32 = arith.constant 2 : i32
      %c0_i32_30 = arith.constant 0 : i32
      %c0_i32_31 = arith.constant 0 : i32
      %35 = tpu.memref_slice %arg5[%c0_i32_30, %c0_i32_31] : memref<512x128xf32, #tpu.memory_space<any>> -> memref<1x128xf32, #tpu.memory_space<any>>
      %c0_i32_32 = arith.constant 0 : i32
      %c0_i32_33 = arith.constant 0 : i32
      %36 = tpu.memref_slice %arg12[%c0_i32_32, %c0_i32_33] : memref<64x128xf32, #tpu.memory_space<vmem>> -> memref<1x128xf32, #tpu.memory_space<vmem>>
      %37 = tpu.memref_slice %arg13[%c2_i32] : memref<3x!tpu.dma_semaphore, #tpu.memory_space<semaphore_mem>> -> memref<1x!tpu.dma_semaphore, #tpu.memory_space<semaphore_mem>>
      %38 = tpu.memref_squeeze %37 : memref<1x!tpu.dma_semaphore, #tpu.memory_space<semaphore_mem>> -> memref<!tpu.dma_semaphore, #tpu.memory_space<semaphore_mem>>
      tpu.wait_dma2 semaphore(%38 : memref<!tpu.dma_semaphore, #tpu.memory_space<semaphore_mem>>) src(%35 : memref<1x128xf32, #tpu.memory_space<any>>) dst(%36 : memref<1x128xf32, #tpu.memory_space<vmem>>)
    }
    %c0 = arith.constant 0 : index
    %c0_5 = arith.constant 0 : index
    %3 = vector.load %arg10[%c0, %c0_5] : memref<64x128xf32, #tpu.memory_space<vmem>>, vector<64x128xf32>
    %c0_6 = arith.constant 0 : index
    %c0_7 = arith.constant 0 : index
    %4 = vector.load %arg11[%c0_6, %c0_7] : memref<64x128xf32, #tpu.memory_space<vmem>>, vector<64x128xf32>
    %c0_8 = arith.constant 0 : index
    %c0_9 = arith.constant 0 : index
    %5 = vector.load %arg12[%c0_8, %c0_9] : memref<64x128xf32, #tpu.memory_space<vmem>>, vector<64x128xf32>
    %c0_10 = arith.constant 0 : index
    %c0_11 = arith.constant 0 : index
    %6 = vector.load %arg6[%c0_10, %c0_11] : memref<64x128xf32, #tpu.memory_space<vmem>>, vector<64x128xf32>
    tpu.vector_store %arg6[%c0_10, %c0_11], %3 {strides = array<i32>} : memref<64x128xf32, #tpu.memory_space<vmem>>, vector<64x128xf32>,
    %c0_12 = arith.constant 0 : index
    %c0_13 = arith.constant 0 : index
    %7 = vector.load %arg7[%c0_12, %c0_13] : memref<64x128xf32, #tpu.memory_space<vmem>>, vector<64x128xf32>
    tpu.vector_store %arg7[%c0_12, %c0_13], %4 {strides = array<i32>} : memref<64x128xf32, #tpu.memory_space<vmem>>, vector<64x128xf32>,
    %c0_14 = arith.constant 0 : index
    %c0_15 = arith.constant 0 : index
    %8 = vector.load %arg8[%c0_14, %c0_15] : memref<64x128xf32, #tpu.memory_space<vmem>>, vector<64x128xf32>
    tpu.vector_store %arg8[%c0_14, %c0_15], %5 {strides = array<i32>} : memref<64x128xf32, #tpu.memory_space<vmem>>, vector<64x128xf32>,
    %9 = arith.mulf %3, %3 : vector<64x128xf32>
    %10 = arith.mulf %4, %4 : vector<64x128xf32>
    %11 = arith.addf %9, %10 : vector<64x128xf32>
    %12 = arith.mulf %5, %5 : vector<64x128xf32>
    %13 = arith.addf %11, %12 : vector<64x128xf32>
    %14 = tpu.iota {dimensions = array<i32: 0>} : vector<64x128xi32>
    %15 = vector.broadcast %0 : i32 to vector<64x128xi32>
    %16 = arith.addi %15, %14 : vector<64x128xi32>
    %c200_i32 = arith.constant 200 : i32
    %17 = vector.broadcast %c200_i32 : i32 to vector<64x128xi32>
    %18 = arith.cmpi slt, %16, %17 : vector<64x128xi32>
    %cst = arith.constant 0.000000e+00 : f32
    %19 = vector.broadcast %cst : f32 to vector<64x128xf32>
    %20 = arith.select %18, %13, %19 : vector<64x128xi1>, vector<64x128xf32>
    %21 = vector.shape_cast %20 : vector<64x128xf32> to vector<1x64x128xf32>
    %cst_16 = arith.constant dense<0.000000e+00> : vector<1xf32>
    %22 = vector.multi_reduction <add>, %21, %cst_16 [1, 2] : vector<1x64x128xf32> to vector<1xf32>
    %23 = vector.shape_cast %22 : vector<1xf32> to vector<1x1x1xf32>
    %24 = vector.extract %23[0, 0, 0] : f32 from vector<1x1x1xf32>
    %25 = vector.broadcast %24 : f32 to vector<1x1x1xf32>
    %c0_17 = arith.constant 0 : index
    %c0_18 = arith.constant 0 : index
    %c0_19 = arith.constant 0 : index
    %26 = vector.load %arg9[%c0_17, %c0_18, %c0_19] : memref<1x1x1xf32, #tpu.memory_space<vmem>>, vector<1x1x1xf32>
    tpu.vector_store %arg9[%c0_17, %c0_18, %c0_19], %25 {strides = array<i32>} : memref<1x1x1xf32, #tpu.memory_space<vmem>>, vector<1x1x1xf32>,
    return
  }
  func.func @transform_2(%arg0: i32, %arg1: memref<256xi32, #tpu.memory_space<smem>>, %arg2: memref<256xi32, #tpu.memory_space<smem>>, %arg3: memref<256xi32, #tpu.memory_space<smem>>) -> (i32, i32) {
    %c0_i32 = arith.constant 0 : i32
    %c0_i32_0 = arith.constant 0 : i32
    return %arg0, %c0_i32 : i32, i32
  }
  func.func @transform_3(%arg0: i32, %arg1: memref<256xi32, #tpu.memory_space<smem>>, %arg2: memref<256xi32, #tpu.memory_space<smem>>, %arg3: memref<256xi32, #tpu.memory_space<smem>>) -> (i32, i32) {
    %c0_i32 = arith.constant 0 : i32
    %c0_i32_0 = arith.constant 0 : i32
    return %arg0, %c0_i32 : i32, i32
  }
  func.func @transform_4(%arg0: i32, %arg1: memref<256xi32, #tpu.memory_space<smem>>, %arg2: memref<256xi32, #tpu.memory_space<smem>>, %arg3: memref<256xi32, #tpu.memory_space<smem>>) -> (i32, i32) {
    %c0_i32 = arith.constant 0 : i32
    %c0_i32_0 = arith.constant 0 : i32
    return %arg0, %c0_i32 : i32, i32
  }
  func.func @transform_5(%arg0: i32, %arg1: memref<256xi32, #tpu.memory_space<smem>>, %arg2: memref<256xi32, #tpu.memory_space<smem>>, %arg3: memref<256xi32, #tpu.memory_space<smem>>) -> (i32, i32, i32) {
    %c0_i32 = arith.constant 0 : i32
    %c0_i32_0 = arith.constant 0 : i32
    %c0_i32_1 = arith.constant 0 : i32
    return %arg0, %c0_i32, %c0_i32_0 : i32, i32, i32
  }
}

</mosaic_0001>

<llo_original>
// kernel: tpu_custom_call.1
$region0: #{tpu_custom_call.1}
  #allocation0 [shape = 'u32[]', space=smem, size = 0x4, offset = 0x4, fixed_abs, tag = 'smem constant byte address 0x4 - core index']
  #allocation1 [shape = 'u32[144,128]{1,0:T(1,128)}', space=vmem, size = 0x12000, scoped, tag = 'internal scratch']
  #allocation2 [shape = 'f32[64,128]{1,0:T(8,128)}', space=vmem, size = 0x8000, scoped, tag = 'scratch operand']
  #allocation3 [shape = 'f32[64,128]{1,0:T(8,128)}', space=vmem, size = 0x8000, scoped, tag = 'scratch operand']
  #allocation4 [shape = 'f32[64,128]{1,0:T(8,128)}', space=vmem, size = 0x8000, scoped, tag = 'scratch operand']
  #allocation5 [shape = 's32[3]{0}', space=sflag, size = 0xc, scoped, tag = 'scratch operand']
  #allocation6 [shape = 's32[1]{0}', space=sflag, size = 0x4, scoped, tag = 'scoped memory for tpu_custom_call.1']
  #allocation7 [shape = 'u8[1024]{0}', space=smem, size = 0x400, scoped, tag = 'prefetched SMEM operand 0']
  #allocation8 [shape = 'u8[1024]{0}', space=smem, size = 0x400, scoped, tag = 'prefetched SMEM operand 1']
  #allocation9 [shape = 'u8[1024]{0}', space=smem, size = 0x400, scoped, tag = 'prefetched SMEM operand 2']
  #allocation15 [shape = 's32[]', space=sflag, size = 0x4, offset = 0, fixed_abs, tag = 'sflag constant byte address 0x0 - dummy sync flag']
  #allocation16 [shape = 's32[]', space=sflag, size = 0x4, offset = 0, fixed_abs, tag = 'sflag constant byte address 0x0 - dummy sync flag']
  #allocation17 [shape = 'u32[]', space=smem, size = 0x4, offset = 0x44, fixed_abs, tag = 'smem constant byte address 0x44 - assertion arg 0']
  #allocation18 [shape = 'u32[]', space=smem, size = 0x4, offset = 0x48, fixed_abs, tag = 'smem constant byte address 0x48 - assertion arg 1']
  #allocation19 [shape = 's32[]', space=sflag, size = 0x4, offset = 0, fixed_abs, tag = 'sflag constant byte address 0x0 - dummy sync flag']
  #allocation20 [shape = 's32[]', space=sflag, size = 0x4, offset = 0, fixed_abs, tag = 'sflag constant byte address 0x0 - dummy sync flag']
  #allocation21 [shape = 's32[]', space=sflag, size = 0x4, offset = 0, fixed_abs, tag = 'sflag constant byte address 0x0 - dummy sync flag']
  #allocation22 [shape = 's32[]', space=sflag, size = 0x4, offset = 0, fixed_abs, tag = 'sflag constant byte address 0x0 - dummy sync flag']
  %s0 = inlined_call_operand.hbm [shape: s32[256], index: 0, kind: input, shape index: {}]
  %s1 = inlined_call_operand.hbm [shape: s32[256], index: 1, kind: input, shape index: {}]
  %s2 = inlined_call_operand.vmem [shape: s32[256], index: 2, kind: input, shape index: {}]
  %s3 = inlined_call_operand.hbm [shape: f32[256,128], index: 3, kind: input, shape index: {}]
  %s4 = inlined_call_operand.hbm [shape: f32[512,128], index: 4, kind: input, shape index: {}]
  %s5 = inlined_call_operand.hbm [shape: f32[256,128], index: 5, kind: output, shape index: {0}]
  %s6 = inlined_call_operand.hbm [shape: f32[256,128], index: 6, kind: output, shape index: {1}]
  %s7 = inlined_call_operand.hbm [shape: f32[256,128], index: 7, kind: output, shape index: {2}]
  %s8 = inlined_call_operand.vmem [shape: f32[4,1,1], index: 8, kind: output, shape index: {3}]
  %9 = xla_tuple %s5, %s6, %s7, %s8
  %s10 = sld [smem:[#allocation0]]
  $region75: #{tpu_custom_call.1} parent=0
    _
  %s12 = ssub.s32 1, %s10
  %s13 = scalar_select 0, %s12, %s10
  %15 = dma.hbm_to_smem %s0, 32, [#allocation7], [#allocation6]
  %17 = dma.hbm_to_smem %s1, 32, [#allocation8], [#allocation6]
  %s18 = sshll.u32 %s2, 4
  %s19 = int_to_ptr.vmem [resolvable:$true] %s18
  %21 = dma.vmem_to_smem %s19, 32, [#allocation9], [#allocation6]
  %22 = dma.done [#allocation6], 96
  %23 = sfence
  $region1: #{tpu_custom_call.1} parent=0
    #allocation10 [shape = 'u8[65536]{0}', space=vmem, size = 0x10000, scoped, tag = 'output window, operand 0']
    #allocation11 [shape = 's32[2]{0}', space=sflag, size = 0x8, scoped, tag = 'scoped memory for tpu_custom_call.1']
    #allocation12 [shape = 'u8[65536]{0}', space=vmem, size = 0x10000, scoped, tag = 'output window, operand 1']
    #allocation13 [shape = 's32[2]{0}', space=sflag, size = 0x8, scoped, tag = 'scoped memory for tpu_custom_call.1']
    #allocation14 [shape = 'u8[65536]{0}', space=vmem, size = 0x10000, scoped, tag = 'output window, operand 2']
    %24 = vsyncpa [#allocation11], 0
    %s25 = scalar_lea.sflag [#allocation11], 1
    %26 = vsyncpa %s25, 0
    %27 = vsyncpa [#allocation13], 0
    %s28 = scalar_lea.sflag [#allocation13], 1
    %29 = vsyncpa %s28, 0
    loop: start=0, step=1, limit=5
    $region2: #{tpu_custom_call.1} parent=1 // loop_pre_header
      _
    $region3: #{tpu_custom_call.1} parent=1 // loop_header
      %s31 = sphi 0, %s35
      %p32 = scmp.ge.s32.totalorder %s31, 5
      %s40 = sphi 0, %s42
      %s43 = sphi 0, %s40
      %s53 = sphi 0, %s43
      %s59 = sphi 0, %s61
      %s62 = sphi 0, %s59
      %s72 = sphi 0, %s62
      %s78 = sphi 0, %s80
      %s81 = sphi 0, %s78
      %s91 = sphi 0, %s81
      %s97 = sphi 0, %s99
      %s100 = sphi 0, %s97
      %s110 = sphi 0, %s100
    $region4: #{tpu_custom_call.1} parent=1 // loop_header_branch
      %34 = sbr.rel (%p32) target = $region8
    $region5: #{tpu_custom_call.1} parent=1 // loop_body
      %s36 = ssub.s32 %s31, 1
      %s37 = sadd.s32 %s31, 1
      %s38 = ssub.s32 %s31, %s37
      %p39 = scmp.eq.s32.totalorder %s38, 0
      %s41 = sadd.s32 %s40, 1
      %s42 = scalar_select %p39, %s40, %s41
      %p44 = pneg %p39
      %p45 = scmp.eq.s32.totalorder %s31, 3
      %p46 = por %p44, %p45
      %p47 = scmp.ne.s32.totalorder %s40, %s43
      %p48 = scmp.eq.s32.totalorder %s31, 0
      %p49 = por %p47, %p48
      %p50 = scmp.ne.s32.totalorder %s40, %s43
      %p51 = scmp.eq.s32.totalorder %s36, 3
      %p52 = por %p50, %p51
      %p54 = scmp.ne.s32.totalorder %s43, %s53
      %p55 = scmp.eq.s32.totalorder %s36, 0
      %p56 = por %p54, %p55
      %s57 = ssub.s32 %s31, %s37
      %p58 = scmp.eq.s32.totalorder %s57, 0
      %s60 = sadd.s32 %s59, 1
      %s61 = scalar_select %p58, %s59, %s60
      %p63 = pneg %p58
      %p64 = scmp.eq.s32.totalorder %s31, 3
      %p65 = por %p63, %p64
      %p66 = scmp.ne.s32.totalorder %s59, %s62
      %p67 = scmp.eq.s32.totalorder %s31, 0
      %p68 = por %p66, %p67
      %p69 = scmp.ne.s32.totalorder %s59, %s62
      %p70 = scmp.eq.s32.totalorder %s36, 3
      %p71 = por %p69, %p70
      %p73 = scmp.ne.s32.totalorder %s62, %s72
      %p74 = scmp.eq.s32.totalorder %s36, 0
      %p75 = por %p73, %p74
      %s76 = ssub.s32 %s31, %s37
      %p77 = scmp.eq.s32.totalorder %s76, 0
      %s79 = sadd.s32 %s78, 1
      %s80 = scalar_select %p77, %s78, %s79
      %p82 = pneg %p77
      %p83 = scmp.eq.s32.totalorder %s31, 3
      %p84 = por %p82, %p83
      %p85 = scmp.ne.s32.totalorder %s78, %s81
      %p86 = scmp.eq.s32.totalorder %s31, 0
      %p87 = por %p85, %p86
      %p88 = scmp.ne.s32.totalorder %s78, %s81
      %p89 = scmp.eq.s32.totalorder %s36, 3
      %p90 = por %p88, %p89
      %p92 = scmp.ne.s32.totalorder %s81, %s91
      %p93 = scmp.eq.s32.totalorder %s36, 0
      %p94 = por %p92, %p93
      %s95 = ssub.s32 %s31, %s37
      %p96 = scmp.eq.s32.totalorder %s95, 0
      %s98 = sadd.s32 %s97, 1
      %s99 = scalar_select %p96, %s97, %s98
      %p101 = pneg %p96
      %p102 = scmp.eq.s32.totalorder %s31, 3
      %p103 = por %p101, %p102
      %p104 = scmp.ne.s32.totalorder %s97, %s100
      %p105 = scmp.eq.s32.totalorder %s31, 0
      %p106 = por %p104, %p105
      %p107 = scmp.ne.s32.totalorder %s97, %s100
      %p108 = scmp.eq.s32.totalorder %s36, 3
      %p109 = por %p107, %p108
      %p111 = scmp.ne.s32.totalorder %s100, %s110
      %p112 = scmp.eq.s32.totalorder %s36, 0
      %p113 = por %p111, %p112
      %p114 = scmp.lt.s32.totalorder %s31, 4
      // Predicated region
      $region9: #{tpu_custom_call.1} parent=5 // pred_check
        %p115 = pneg %p114
      $region10: #{tpu_custom_call.1} parent=5 // pred_check_branch
        %117 = sbr.rel (%p115) target = $region12
      $region11: #{tpu_custom_call.1} parent=5 // pred_region
        %p118 = pneg %p49
        %p119 = pneg %p46
        %s120 = sand.u32 %s40, 1
        %s121 = scalar_lea.sflag [#allocation11], %s120
        %s122 = sand.u32 %s40, 1
        %s123 = smul.addr %s122, 64
        %s124 = scalar_lea.vmem [#allocation10], %s123
        %p125 = pneg %p68
        %p126 = pneg %p65
        %s127 = sand.u32 %s31, 1
        %s128 = scalar_lea.sflag [#allocation13], %s127
        %s129 = sand.u32 %s59, 1
        %s130 = smul.addr %s129, 64
        %s131 = scalar_lea.vmem [#allocation12], %s130
        %p132 = pneg %p87
        %p133 = pneg %p84
        %s134 = sand.u32 %s31, 1
        %s135 = scalar_lea.sflag [#allocation13], %s134
        %s136 = sand.u32 %s78, 1
        %s137 = smul.addr %s136, 64
        %s138 = scalar_lea.vmem [#allocation14], %s137
        %p139 = pneg %p106
        %p140 = pneg %p103
        %p141 = scmp.lt.s32.totalorder %s31, 3
        %s142 = scalar_select %p141, %s31, 3
        %s143 = scalar_lea.vmem %s8, %s142
        %s144 = smul.u32 8, %s31
        %s145 = smul.u32 8, %s31
        %s146 = smul.u32 8, %s31
        %p147 = scmp.lt.s32.totalorder %s31, 3
        %s148 = scalar_select %p147, %s31, 3
        %s149 = scalar_lea.vmem %s8, %s148
        %s150 = smul.u32 %s31, 64
        loop: start=0, step=1, limit=64
        $region13: #{tpu_custom_call.1} parent=11 // loop_pre_header
          _
        $region14: #{tpu_custom_call.1} parent=11 // loop_header
          %s152 = sphi 0, %s156
          %p153 = scmp.ge.s32.totalorder %s152, 64
        $region15: #{tpu_custom_call.1} parent=11 // loop_header_branch
          %155 = sbr.rel (%p153) target = $region19
        $region16: #{tpu_custom_call.1} parent=11 // loop_body
          %s157 = sadd.s32 %s150, %s152
          %s158 = sld [smem:[#allocation7 + %s157]]
          %s159 = sld [smem:[#allocation8 + %s157]]
          %s160 = sld [smem:[#allocation9 + %s157]]
          %s161 = smul.addr %s158, 16
          %s162 = scalar_lea.hbm %s3, %s161
          %s163 = scalar_lea.vmem [#allocation2], %s152
          // Predicated region
          $region20: #{tpu_custom_call.1} parent=16 // pred_check
            _
          $region21: #{tpu_custom_call.1} parent=16 // pred_check_branch
            %165 = sbr.rel target = $region23
          $region22: #{tpu_custom_call.1} parent=16 // pred_region
            %166 = sst [smem:[#allocation17]] [#allocation16]
            %167 = sst [smem:[#allocation18]] [#allocation15]
          $region23: #{tpu_custom_call.1} parent=16 // pred_fallthru
            _
          %169 = shalt.err (0)
          %s171 = sshll.u32 %s163, 4
          %s172 = int_to_ptr.vmem [resolvable:$true] %s171
          %174 = dma.hbm_to_vmem [thread:$0]  %s162, 16, %s172, [#allocation5]
          %s175 = smul.addr %s159, 16
          %s176 = scalar_lea.hbm %s4, %s175
          %s177 = scalar_lea.vmem [#allocation3], %s152
          %s178 = scalar_lea.sflag [#allocation5], 1
          // Predicated region
          $region24: #{tpu_custom_call.1} parent=16 // pred_check
            _
          $region25: #{tpu_custom_call.1} parent=16 // pred_check_branch
            %180 = sbr.rel target = $region27
          $region26: #{tpu_custom_call.1} parent=16 // pred_region
            %181 = sst [smem:[#allocation17]] [#allocation20]
            %182 = sst [smem:[#allocation18]] [#allocation19]
          $region27: #{tpu_custom_call.1} parent=16 // pred_fallthru
            _
          %184 = shalt.err (0)
          %s186 = sshll.u32 %s177, 4
          %s187 = int_to_ptr.vmem [resolvable:$true] %s186
          %189 = dma.hbm_to_vmem [thread:$0]  %s176, 16, %s187, %s178
          %s190 = smul.addr %s160, 16
          %s191 = scalar_lea.hbm %s4, %s190
          %s192 = scalar_lea.vmem [#allocation4], %s152
          %s193 = scalar_lea.sflag [#allocation5], 2
          // Predicated region
          $region28: #{tpu_custom_call.1} parent=16 // pred_check
            _
          $region29: #{tpu_custom_call.1} parent=16 // pred_check_branch
            %195 = sbr.rel target = $region31
          $region30: #{tpu_custom_call.1} parent=16 // pred_region
            %196 = sst [smem:[#allocation17]] [#allocation22]
            %197 = sst [smem:[#allocation18]] [#allocation21]
          $region31: #{tpu_custom_call.1} parent=16 // pred_fallthru
            _
          %199 = shalt.err (0)
          %s201 = sshll.u32 %s192, 4
          %s202 = int_to_ptr.vmem [resolvable:$true] %s201
          %204 = dma.hbm_to_vmem [thread:$0]  %s191, 16, %s202, %s193
        $region17: #{tpu_custom_call.1} parent=11 // loop_footer
          %s156 = sadd.s32 1, %s152
        $region18: #{tpu_custom_call.1} parent=11 // loop_footer_branch
          %151 = sbr.rel target = $region14
        $region19: #{tpu_custom_call.1} parent=11 // loop_exit
          _
        loop: start=0, step=1, limit=64
        $region32: #{tpu_custom_call.1} parent=11 // loop_pre_header
          _
        $region33: #{tpu_custom_call.1} parent=11 // loop_header
          %s206 = sphi 0, %s210
          %p207 = scmp.ge.s32.totalorder %s206, 64
        $region34: #{tpu_custom_call.1} parent=11 // loop_header_branch
          %209 = sbr.rel (%p207) target = $region38
        $region35: #{tpu_custom_call.1} parent=11 // loop_body
          %s211 = smul.u32 1, 1
          %s212 = sshll.u32 %s211, 4
          %213 = dma.done [#allocation5], %s212
          %s214 = scalar_lea.sflag [#allocation5], 1
          %s215 = sshll.u32 %s211, 4
          %216 = dma.done %s214, %s215
          %s217 = scalar_lea.sflag [#allocation5], 2
          %s218 = sshll.u32 %s211, 4
          %219 = dma.done %s217, %s218
        $region36: #{tpu_custom_call.1} parent=11 // loop_footer
          %s210 = sadd.s32 1, %s206
        $region37: #{tpu_custom_call.1} parent=11 // loop_footer_branch
          %205 = sbr.rel target = $region33
        $region38: #{tpu_custom_call.1} parent=11 // loop_exit
          _
        %v220 = vld [vmem:[#allocation2] sm:$0xff]
        %v221 = vld [vmem:[#allocation2 + $0x8] sm:$0xff]
        %v222 = vld [vmem:[#allocation2 + $0x10] sm:$0xff]
        %v223 = vld [vmem:[#allocation2 + $0x18] sm:$0xff]
        %v224 = vld [vmem:[#allocation2 + $0x20] sm:$0xff]
        %v225 = vld [vmem:[#allocation2 + $0x28] sm:$0xff]
        %v226 = vld [vmem:[#allocation2 + $0x30] sm:$0xff]
        %v227 = vld [vmem:[#allocation2 + $0x38] sm:$0xff]
        %v228 = vld [vmem:[#allocation3] sm:$0xff]
        %v229 = vld [vmem:[#allocation3 + $0x8] sm:$0xff]
        %v230 = vld [vmem:[#allocation3 + $0x10] sm:$0xff]
        %v231 = vld [vmem:[#allocation3 + $0x18] sm:$0xff]
        %v232 = vld [vmem:[#allocation3 + $0x20] sm:$0xff]
        %v233 = vld [vmem:[#allocation3 + $0x28] sm:$0xff]
        %v234 = vld [vmem:[#allocation3 + $0x30] sm:$0xff]
        %v235 = vld [vmem:[#allocation3 + $0x38] sm:$0xff]
        %v236 = vld [vmem:[#allocation4] sm:$0xff]
        %v237 = vld [vmem:[#allocation4 + $0x8] sm:$0xff]
        %v238 = vld [vmem:[#allocation4 + $0x10] sm:$0xff]
        %v239 = vld [vmem:[#allocation4 + $0x18] sm:$0xff]
        %v240 = vld [vmem:[#allocation4 + $0x20] sm:$0xff]
        %v241 = vld [vmem:[#allocation4 + $0x28] sm:$0xff]
        %v242 = vld [vmem:[#allocation4 + $0x30] sm:$0xff]
        %v243 = vld [vmem:[#allocation4 + $0x38] sm:$0xff]
        %244 = vst [vmem:[%s124] sm:$0xff] %v220
        %245 = vst [vmem:[%s124 + $0x8] sm:$0xff] %v221
        %246 = vst [vmem:[%s124 + $0x10] sm:$0xff] %v222
        %247 = vst [vmem:[%s124 + $0x18] sm:$0xff] %v223
        %248 = vst [vmem:[%s124 + $0x20] sm:$0xff] %v224
        %249 = vst [vmem:[%s124 + $0x28] sm:$0xff] %v225
        %250 = vst [vmem:[%s124 + $0x30] sm:$0xff] %v226
        %251 = vst [vmem:[%s124 + $0x38] sm:$0xff] %v227
        %252 = vst [vmem:[%s131] sm:$0xff] %v228
        %253 = vst [vmem:[%s131 + $0x8] sm:$0xff] %v229
        %254 = vst [vmem:[%s131 + $0x10] sm:$0xff] %v230
        %255 = vst [vmem:[%s131 + $0x18] sm:$0xff] %v231
        %256 = vst [vmem:[%s131 + $0x20] sm:$0xff] %v232
        %257 = vst [vmem:[%s131 + $0x28] sm:$0xff] %v233
        %258 = vst [vmem:[%s131 + $0x30] sm:$0xff] %v234
        %259 = vst [vmem:[%s131 + $0x38] sm:$0xff] %v235
        %260 = vst [vmem:[%s138] sm:$0xff] %v236
        %261 = vst [vmem:[%s138 + $0x8] sm:$0xff] %v237
        %262 = vst [vmem:[%s138 + $0x10] sm:$0xff] %v238
        %263 = vst [vmem:[%s138 + $0x18] sm:$0xff] %v239
        %264 = vst [vmem:[%s138 + $0x20] sm:$0xff] %v240
        %265 = vst [vmem:[%s138 + $0x28] sm:$0xff] %v241
        %266 = vst [vmem:[%s138 + $0x30] sm:$0xff] %v242
        %267 = vst [vmem:[%s138 + $0x38] sm:$0xff] %v243
        %v268 = vmul.f32 %v220, %v220
        %v269 = vmul.f32 %v221, %v221
        %v270 = vmul.f32 %v222, %v222
        %v271 = vmul.f32 %v223, %v223
        %v272 = vmul.f32 %v224, %v224
        %v273 = vmul.f32 %v225, %v225
        %v274 = vmul.f32 %v226, %v226
        %v275 = vmul.f32 %v227, %v227
        %v276 = vmul.f32 %v228, %v228
        %v277 = vmul.f32 %v229, %v229
        %v278 = vmul.f32 %v230, %v230
        %v279 = vmul.f32 %v231, %v231
        %v280 = vmul.f32 %v232, %v232
        %v281 = vmul.f32 %v233, %v233
        %v282 = vmul.f32 %v234, %v234
        %v283 = vmul.f32 %v235, %v235
        %v284 = vadd.f32 %v268, %v276
        %v285 = vadd.f32 %v269, %v277
        %v286 = vadd.f32 %v270, %v278
        %v287 = vadd.f32 %v271, %v279
        %v288 = vadd.f32 %v272, %v280
        %v289 = vadd.f32 %v273, %v281
        %v290 = vadd.f32 %v274, %v282
        %v291 = vadd.f32 %v275, %v283
        %v292 = vmul.f32 %v236, %v236
        %v293 = vmul.f32 %v237, %v237
        %v294 = vmul.f32 %v238, %v238
        %v295 = vmul.f32 %v239, %v239
        %v296 = vmul.f32 %v240, %v240
        %v297 = vmul.f32 %v241, %v241
        %v298 = vmul.f32 %v242, %v242
        %v299 = vmul.f32 %v243, %v243
        %v300 = vadd.f32 %v284, %v292
        %v301 = vadd.f32 %v285, %v293
        %v302 = vadd.f32 %v286, %v294
        %v303 = vadd.f32 %v287, %v295
        %v304 = vadd.f32 %v288, %v296
        %v305 = vadd.f32 %v289, %v297
        %v306 = vadd.f32 %v290, %v298
        %v307 = vadd.f32 %v291, %v299
        %v308 = vlaneseq
        %v309 = vshrl.u32 %v308, 7
        %v310 = vadd.s32 %v309, 8
        %v311 = vadd.s32 %v309, 16
        %v312 = vadd.s32 %v309, 24
        %v313 = vadd.s32 %v309, 32
        %v314 = vadd.s32 %v309, 40
        %v315 = vadd.s32 %v309, 48
        %v316 = vadd.s32 %v309, 56
        %v317 = vstv %s150
        %v318 = vadd.s32 %v317, %v309
        %v319 = vadd.s32 %v317, %v310
        %v320 = vadd.s32 %v317, %v311
        %v321 = vadd.s32 %v317, %v312
        %v322 = vadd.s32 %v317, %v313
        %v323 = vadd.s32 %v317, %v314
        %v324 = vadd.s32 %v317, %v315
        %v325 = vadd.s32 %v317, %v316
        %vm326 = vcmp.lt.s32.totalorder %v318, 200
        %vm327 = vcmp.lt.s32.totalorder %v319, 200
        %vm328 = vcmp.lt.s32.totalorder %v320, 200
        %vm329 = vcmp.lt.s32.totalorder %v321, 200
        %vm330 = vcmp.lt.s32.totalorder %v322, 200
        %vm331 = vcmp.lt.s32.totalorder %v323, 200
        %vm332 = vcmp.lt.s32.totalorder %v324, 200
        %vm333 = vcmp.lt.s32.totalorder %v325, 200
        %v334 = vsel %vm326, %v300, 0.0
        %v335 = vsel %vm327, %v301, 0.0
        %v336 = vsel %vm328, %v302, 0.0
        %v337 = vsel %vm329, %v303, 0.0
        %v338 = vsel %vm330, %v304, 0.0
        %v339 = vsel %vm331, %v305, 0.0
        %v340 = vsel %vm332, %v306, 0.0
        %v341 = vsel %vm333, %v307, 0.0
        %v342 = vadd.f32 %v334, %v335
        %v343 = vadd.f32 %v342, %v336
        %v344 = vadd.f32 %v343, %v337
        %v345 = vadd.f32 %v344, %v338
        %v346 = vadd.f32 %v345, %v339
        %v347 = vadd.f32 %v346, %v340
        %v348 = vadd.f32 %v347, %v341
        %349 = vadd.xlane.f32.xlu0 %v348
        %v350 = vpop.xlane.xlu0 %349
        %v351 = vrot.slane %v350, 4
        %v352 = vadd.f32 %v350, %v351
        %v353 = vrot.slane %v352, 2
        %v354 = vadd.f32 %v352, %v353
        %v355 = vrot.slane %v354, 1
        %v356 = vadd.f32 %v354, %v355
        %s357 = vtos %v356
        %v358 = vstv %s357
        %vm359 = vcmask 0
        %360 = vst.msk [vmem:[%s149] sm:$0x1] %vm359, %v358
        %s361 = sand.u32 %s40, 1
        %s362 = scalar_lea.sflag [#allocation11], %s361
        %s363 = sand.u32 %s40, 1
        %s364 = smul.addr %s363, 64
        %s365 = scalar_lea.vmem [#allocation10], %s364
        %s366 = sand.u32 %s31, 1
        %s367 = scalar_lea.sflag [#allocation13], %s366
        %s368 = sand.u32 %s59, 1
        %s369 = smul.addr %s368, 64
        %s370 = scalar_lea.vmem [#allocation12], %s369
        %s371 = sand.u32 %s31, 1
        %s372 = scalar_lea.sflag [#allocation13], %s371
        %s373 = sand.u32 %s78, 1
        %s374 = smul.addr %s373, 64
        %s375 = scalar_lea.vmem [#allocation14], %s374
        %p376 = scmp.lt.s32.totalorder %s31, 3
        %s377 = scalar_select %p376, %s31, 3
        %s378 = scalar_lea.vmem %s8, %s377
        // Predicated region
        $region39: #{tpu_custom_call.1} parent=11 // pred_check
          %p379 = pneg %p46
        $region40: #{tpu_custom_call.1} parent=11 // pred_check_branch
          %381 = sbr.rel (%p379) target = $region42
        $region41: #{tpu_custom_call.1} parent=11 // pred_region
          %s382 = smul.u32 8, %s31
          %s384 = ssub.s32 1024, 1024
          %385 = vsyncadd %s362, %s384
          %s386 = smul.addr %s382, 128
          %s387 = scalar_lea.hbm %s5, %s386
          %s388 = sshll.u32 %s365, 4
          %s389 = int_to_ptr.vmem [resolvable:$true] %s388
          %394 = dma.vmem_to_hbm [thread:$0]  %s389, 1024, %s387, %s362, 128, 128, 8
        $region42: #{tpu_custom_call.1} parent=11 // pred_fallthru
          _
        // Predicated region
        $region43: #{tpu_custom_call.1} parent=11 // pred_check
          %p395 = pneg %p65
        $region44: #{tpu_custom_call.1} parent=11 // pred_check_branch
          %397 = sbr.rel (%p395) target = $region46
        $region45: #{tpu_custom_call.1} parent=11 // pred_region
          %s398 = smul.u32 8, %s31
          %s400 = ssub.s32 1024, 1024
          %401 = vsyncadd %s367, %s400
          %s402 = smul.addr %s398, 128
          %s403 = scalar_lea.hbm %s6, %s402
          %s404 = sshll.u32 %s370, 4
          %s405 = int_to_ptr.vmem [resolvable:$true] %s404
          %410 = dma.vmem_to_hbm [thread:$0]  %s405, 1024, %s403, %s367, 128, 128, 8
        $region46: #{tpu_custom_call.1} parent=11 // pred_fallthru
          _
        // Predicated region
        $region47: #{tpu_custom_call.1} parent=11 // pred_check
          %p411 = pneg %p84
        $region48: #{tpu_custom_call.1} parent=11 // pred_check_branch
          %413 = sbr.rel (%p411) target = $region50
        $region49: #{tpu_custom_call.1} parent=11 // pred_region
          %s414 = smul.u32 8, %s31
          %s416 = ssub.s32 1024, 1024
          %417 = vsyncadd %s372, %s416
          %s418 = smul.addr %s414, 128
          %s419 = scalar_lea.hbm %s7, %s418
          %s420 = sshll.u32 %s375, 4
          %s421 = int_to_ptr.vmem [resolvable:$true] %s420
          %426 = dma.vmem_to_hbm [thread:$0]  %s421, 1024, %s419, %s372, 128, 128, 8
        $region50: #{tpu_custom_call.1} parent=11 // pred_fallthru
          _
        // Predicated region
        $region51: #{tpu_custom_call.1} parent=11 // pred_check
          %p427 = pneg %p103
        $region52: #{tpu_custom_call.1} parent=11 // pred_check_branch
          %429 = sbr.rel (%p427) target = $region54
        $region53: #{tpu_custom_call.1} parent=11 // pred_region
          _
        $region54: #{tpu_custom_call.1} parent=11 // pred_fallthru
          _
      $region12: #{tpu_custom_call.1} parent=5 // pred_fallthru
        _
      %p430 = scmp.le.s32.totalorder 1, %s31
      // Predicated region
      $region55: #{tpu_custom_call.1} parent=5 // pred_check
        %p431 = pneg %p430
      $region56: #{tpu_custom_call.1} parent=5 // pred_check_branch
        %433 = sbr.rel (%p431) target = $region58
      $region57: #{tpu_custom_call.1} parent=5 // pred_region
        %s434 = ssub.s32 %s31, 1
        // Predicated region
        $region59: #{tpu_custom_call.1} parent=57 // pred_check
          %p435 = pneg %p52
        $region60: #{tpu_custom_call.1} parent=57 // pred_check_branch
          %437 = sbr.rel (%p435) target = $region62
        $region61: #{tpu_custom_call.1} parent=57 // pred_region
          %s438 = sand.u32 %s43, 1
          %s439 = scalar_lea.sflag [#allocation11], %s438
          %s440 = sand.u32 %s43, 1
          %s441 = smul.addr %s440, 64
          %s442 = scalar_lea.vmem [#allocation10], %s441
          %443 = dma.done %s439, 1024
        $region62: #{tpu_custom_call.1} parent=57 // pred_fallthru
          _
        // Predicated region
        $region63: #{tpu_custom_call.1} parent=57 // pred_check
          %p444 = pneg %p71
        $region64: #{tpu_custom_call.1} parent=57 // pred_check_branch
          %446 = sbr.rel (%p444) target = $region66
        $region65: #{tpu_custom_call.1} parent=57 // pred_region
          %s447 = sand.u32 %s36, 1
          %s448 = scalar_lea.sflag [#allocation13], %s447
          %s449 = sand.u32 %s62, 1
          %s450 = smul.addr %s449, 64
          %s451 = scalar_lea.vmem [#allocation12], %s450
          %452 = dma.done %s448, 1024
        $region66: #{tpu_custom_call.1} parent=57 // pred_fallthru
          _
        // Predicated region
        $region67: #{tpu_custom_call.1} parent=57 // pred_check
          %p453 = pneg %p90
        $region68: #{tpu_custom_call.1} parent=57 // pred_check_branch
          %455 = sbr.rel (%p453) target = $region70
        $region69: #{tpu_custom_call.1} parent=57 // pred_region
          %s456 = sand.u32 %s36, 1
          %s457 = scalar_lea.sflag [#allocation13], %s456
          %s458 = sand.u32 %s81, 1
          %s459 = smul.addr %s458, 64
          %s460 = scalar_lea.vmem [#allocation14], %s459
          %461 = dma.done %s457, 1024
        $region70: #{tpu_custom_call.1} parent=57 // pred_fallthru
          _
        // Predicated region
        $region71: #{tpu_custom_call.1} parent=57 // pred_check
          %p462 = pneg %p109
        $region72: #{tpu_custom_call.1} parent=57 // pred_check_branch
          %464 = sbr.rel (%p462) target = $region74
        $region73: #{tpu_custom_call.1} parent=57 // pred_region
          %p465 = scmp.lt.s32.totalorder %s36, 3
          %s466 = scalar_select %p465, %s36, 3
          %s467 = scalar_lea.vmem %s8, %s466
        $region74: #{tpu_custom_call.1} parent=57 // pred_fallthru
          _
      $region58: #{tpu_custom_call.1} parent=5 // pred_fallthru
        _
    $region6: #{tpu_custom_call.1} parent=1 // loop_footer
      %s35 = sadd.s32 1, %s31
    $region7: #{tpu_custom_call.1} parent=1 // loop_footer_branch
      %30 = sbr.rel target = $region3
    $region8: #{tpu_custom_call.1} parent=1 // loop_exit
      _
    %468 = vsyncpa [#allocation11], 1
    %s469 = scalar_lea.sflag [#allocation11], 1
    %470 = vsyncpa %s469, 1
    %471 = vsyncpa [#allocation13], 1
    %s472 = scalar_lea.sflag [#allocation13], 1
    %473 = vsyncpa %s472, 1
  %474 = vsyncmov [#allocation5]
  %s475 = vpop.sfrf %474
  %p476 = scmp.eq.s32.totalorder %s475, 0
  %p477 = pneg %p476
  %479 = shalt.err (%p477)
  %s480 = scalar_lea.sflag [#allocation5], 1
  %481 = vsyncmov %s480
  %s482 = vpop.sfrf %481
  %p483 = scmp.eq.s32.totalorder %s482, 0
  %p484 = pneg %p483
  %486 = shalt.err (%p484)
  %s487 = scalar_lea.sflag [#allocation5], 2
  %488 = vsyncmov %s487
  %s489 = vpop.sfrf %488
  %p490 = scmp.eq.s32.totalorder %s489, 0
  %p491 = pneg %p490
  %493 = shalt.err (%p491)

</llo_original>
